<compile_context>
chip_gen: v7x
topology: tpu7x:2x2x1
jax: 0.10.0
libtpu: 0.0.40
codegen_flags: <defaults>
</compile_context>

<pallas_src>
import functools

import numpy as np
import jax
import jax.numpy as jnp
from jax.experimental import pallas as pl
from jax.experimental.pallas import tpu as pltpu


VGG11_ARCH = (8, 'M', 16, 'M', 32, 32, 'M')      # scaled-down vgg11-style arch
CLF_DIMS = (32, 64, 64, 10)                      # input_dim, mid_1, mid_2, out


# ------------------------ pltpu.roll convention probe -----------------------

def _roll_probe_kernel(x_ref, o_ref):
    o_ref[...] = pltpu.roll(x_ref[...], 3, axis=1)


@functools.lru_cache(maxsize=None)
def _roll_like_jnp():
    """True if pltpu.roll matches jnp.roll sign convention (out[i]=in[i-shift])."""
    x = jnp.arange(8 * 256, dtype=jnp.float32).reshape(8, 256)
    y = pl.pallas_call(
        _roll_probe_kernel,
        out_shape=jax.ShapeDtypeStruct((8, 256), jnp.float32),
    )(x)
    y = np.asarray(jax.block_until_ready(y))
    if np.array_equal(y, np.asarray(jnp.roll(x, 3, axis=1))):
        return True
    if np.array_equal(y, np.asarray(jnp.roll(x, -3, axis=1))):
        return False
    raise RuntimeError("unexpected pltpu.roll semantics")


# --------------------------- static plan / masks ----------------------------

def _make_plan(arch):
    """Walk the arch; track the lane-grid dilation each stage operates at."""
    plan, conv_dils = [], []
    dil, ci = 1, 0
    for info in arch:
        if info == 'M':
            plan.append(('pool', dil))
            dil *= 2
        else:
            plan.append(('conv', ci, dil))
            conv_dils.append(dil)
            ci += 1
    return plan, conv_dils, dil


def _conv_masks(h, w, dil, b_tile):
    """(10, 1, B*H*W) f32: rows 0..8 = border-only tap masks, row 9 = grid mask.

    Border mask k is zero only where the output lane is on the dilated grid AND
    tap k falls outside the (dilated) image; row 4 (center tap) is all ones.
    Row 9 is the dilation-validity mask applied once per conv stage (hoisted).
    """
    s = h * w
    y = np.arange(s) // w
    x = np.arange(s) % w
    grid_ok = (y % dil == 0) & (x % dil == 0)
    yo, xo = y // dil, x // dil
    ly, lx = h // dil, w // dil
    m = np.ones((10, 1, s), np.float32)
    for k in range(9):
        if k == 4:                        # center tap: always in-bounds
            continue
        dy, dx = k // 3 - 1, k % 3 - 1
        tap_in = (yo + dy >= 0) & (yo + dy < ly) & (xo + dx >= 0) & (xo + dx < lx)
        m[k, 0] = np.where(grid_ok & ~tap_in, 0.0, 1.0).astype(np.float32)
    m[9, 0] = grid_ok.astype(np.float32)
    return np.tile(m, (1, 1, b_tile))     # same pattern for every folded image


def _avg_row(h, w, dil, b_tile):
    """(1, B*H*W) f32 per-lane averaging weights over the surviving lanes."""
    s = h * w
    y = np.arange(s) // w
    x = np.arange(s) % w
    ok = (y % dil == 0) & (x % dil == 0)
    row = (ok.astype(np.float32) / float(ok.sum())).reshape(1, s)
    return np.tile(row, (1, b_tile))


def _pick_batch_tile(n, cap=8):
    """Largest divisor of n not above cap (cap keeps the tap slab small)."""
    for t in range(min(n, cap), 0, -1):
        if n % t == 0:
            return t
    return 1


# ----------------------------- the fused kernel -----------------------------

def _build_vgg_kernel(plan, img_w, img_s, b_tile, n_conv, n_lin, roll_like_jnp):
    lanes = b_tile * img_s

    def shift_for(off):
        # we want tap[:, s] = act[:, (s + off) % lanes]
        return (-off) % lanes if roll_like_jnp else off % lanes

    def kernel(*refs):
        x_ref = refs[0]
        conv_refs = [(refs[1 + 3 * i], refs[2 + 3 * i], refs[3 + 3 * i])
                     for i in range(n_conv)]
        base = 1 + 3 * n_conv
        avg_ref = refs[base]
        lin_refs = [(refs[base + 1 + 2 * i], refs[base + 2 + 2 * i])
                    for i in range(n_lin)]
        o_ref = refs[base + 1 + 2 * n_lin]

        act = x_ref[0]                                   # (Cin, B*S) lane-dense f32

        for op in plan:
            if op[0] == 'conv':                          # 3x3 conv + ReLU (fused K)
                _, ci, dil = op
                w_ref, b_ref, m_ref = conv_refs[ci]
                if dil > 1:
                    act = act * m_ref[9]                 # hoisted dilation-grid mask
                taps = []
                for k in range(9):
                    dy, dx = k // 3 - 1, k % 3 - 1
                    off = (dy * img_w + dx) * dil
                    t = act if off == 0 else pltpu.roll(act, shift_for(off), axis=1)
                    if k != 4:                           # center tap needs no mask
                        t = t * m_ref[k]                 # border-only mask
                    taps.append(t)
                # Stacked "im2col" tile in VMEM; one K=9*Cin MXU matmul per conv.
                taps_mat = jnp.concatenate(taps, axis=0).astype(jnp.bfloat16)
                acc = jnp.dot(w_ref[...], taps_mat,
                              preferred_element_type=jnp.float32)
                act = jnp.maximum(acc + b_ref[...], 0.0)
            else:                                        # 2x2/s2 max-pool
                _, dil = op
                pooled = act
                for off in (dil, img_w * dil, img_w * dil + dil):
                    pooled = jnp.maximum(
                        pooled, pltpu.roll(act, shift_for(off), axis=1))
                act = pooled                             # valid lanes: new dilation

        # adaptive avg pool (output_size=1): VPU weighted multiply + per-image
        # XLU lane reduction (no degenerate N=1 MXU matmul).
        weighted = act * avg_ref[...]                    # (C, B*S)
        feats = [jnp.sum(weighted[:, b * img_s:(b + 1) * img_s],
                         axis=1, keepdims=True) for b in range(b_tile)]
        feat_cb = feats[0] if b_tile == 1 else jnp.concatenate(feats, axis=1)

        # classifier: (B, C) @ (C, out) — classes/features on the lane axis.
        h = feat_cb.astype(jnp.bfloat16)                 # (C, B)
        for li, (w_ref, b_ref) in enumerate(lin_refs):
            if li == 0:
                h = jnp.einsum('cb,co->bo', h, w_ref[...],
                               preferred_element_type=jnp.float32)
            else:
                h = jnp.dot(h, w_ref[...], preferred_element_type=jnp.float32)
            h = h + b_ref[...]
            if li + 1 < n_lin:
                # TODO(synk): Dropout(0.5) is identity (inference-mode semantics).
                h = jnp.maximum(h, 0.0).astype(jnp.bfloat16)
        o_ref[0] = h.astype(o_ref.dtype)                 # (B_TILE, out_dim) lane-dense

    return kernel


def vgg_forward(params, x_nchw, arch=VGG11_ARCH, batch_tile=None):
    n, c, hh, ww = x_nchw.shape
    s = hh * ww
    plan, conv_dils, final_dil = _make_plan(arch)
    n_pool = sum(1 for a in arch if a == 'M')
    # Dilated-lane pooling requires the spatial dims to survive every halving.
    assert hh % (2 ** n_pool) == 0 and ww % (2 ** n_pool) == 0, \
        "H and W must be divisible by 2**num_pools"
    roll_like_jnp = _roll_like_jnp()

    b_tile = batch_tile if batch_tile is not None else _pick_batch_tile(n)
    assert n % b_tile == 0, "batch_tile must divide the batch size"
    g = n // b_tile
    lanes = b_tile * s

    # input: NCHW -> (G, C_pad, B_TILE*H*W); channels padded to the sublane tile.
    cin_pad = (-c) % 8
    c_pad = c + cin_pad
    x3 = jnp.pad(x_nchw.reshape(n, c, s).astype(jnp.float32),
                 ((0, 0), (0, cin_pad), (0, 0)))
    slab = x3.reshape(g, b_tile, c_pad, s).transpose(0, 2, 1, 3) \
             .reshape(g, c_pad, lanes)

    inputs = [slab]
    for ci, (w, b) in enumerate(params['convs']):
        cout = w.shape[0]
        w_t = jnp.transpose(w, (0, 2, 3, 1))             # (O, ky, kx, I)
        if ci == 0 and cin_pad:
            w_t = jnp.pad(w_t, ((0, 0), (0, 0), (0, 0), (0, cin_pad)))
        w_mat = w_t.reshape(cout, -1).astype(jnp.bfloat16)   # (O, 9*I) bf16
        inputs += [w_mat,
                   b.reshape(cout, 1).astype(jnp.float32),
                   jnp.asarray(_conv_masks(hh, ww, conv_dils[ci], b_tile))]
    inputs.append(jnp.asarray(_avg_row(hh, ww, final_dil, b_tile)))
    for (w, b) in params['linears']:
        inputs += [w.astype(jnp.bfloat16),               # (in, out) bf16
                   b.reshape(1, -1).astype(jnp.float32)]

    out_dim = params['linears'][-1][0].shape[1]

    in_specs = [pl.BlockSpec((1, c_pad, lanes), lambda i: (i, 0, 0))]
    for a in inputs[1:]:
        in_specs.append(pl.BlockSpec(a.shape, lambda i, _nd=a.ndim: (0,) * _nd))
    out_spec = pl.BlockSpec((1, b_tile, out_dim), lambda i: (i, 0, 0))

    kernel = _build_vgg_kernel(plan, ww, s, b_tile, len(params['convs']),
                               len(params['linears']), roll_like_jnp)
    out = pl.pallas_call(
        kernel,
        out_shape=jax.ShapeDtypeStruct((g, b_tile, out_dim), jnp.float32),
        grid=(g,),
        in_specs=in_specs,
        out_specs=out_spec,
        compiler_params=pltpu.CompilerParams(
            dimension_semantics=("parallel",)),
    )(*inputs)
    return out.reshape(n, out_dim)


# ------------------------------ params / reference --------------------------

def init_params(key, image_channels, arch, clf_dims):
    params = {'convs': [], 'linears': []}
    cin = image_channels
    for info in arch:
        if info == 'M':
            continue
        key, kw, kb = jax.random.split(key, 3)
        fan_in = 9 * cin
        w = jax.random.normal(kw, (info, cin, 3, 3), jnp.float32) * (2.0 / fan_in) ** 0.5
        b = jax.random.normal(kb, (info,), jnp.float32) * 0.01
        params['convs'].append((w, b))
        cin = info
    for i in range(len(clf_dims) - 1):
        key, kw, kb = jax.random.split(key, 3)
        w = jax.random.normal(kw, (clf_dims[i], clf_dims[i + 1]), jnp.float32) \
            * (2.0 / clf_dims[i]) ** 0.5
        b = jax.random.normal(kb, (clf_dims[i + 1],), jnp.float32) * 0.01
        params['linears'].append((w, b))
    return params


def _im2col_3x3(x):
    n, h, w, cin = x.shape
    xp = jnp.pad(x, ((0, 0), (1, 1), (1, 1), (0, 0)))
    return jnp.concatenate(
        [xp[:, ky:ky + h, kx:kx + w, :] for ky in range(3) for kx in range(3)],
        axis=-1)


def vgg_reference(params, x_nchw, arch=VGG11_ARCH):
    """Pure-JAX f32 reference (same math, no Pallas) for a sanity check."""
    x = jnp.transpose(x_nchw, (0, 2, 3, 1)).astype(jnp.float32)
    ci = 0
    for info in arch:
        if info == 'M':
            n, h, w, c = x.shape
            x = x.reshape(n, h // 2, 2, w // 2, 2, c).max(axis=(2, 4))
        else:
            wgt, b = params['convs'][ci]
            ci += 1
            n, h, wd, cin = x.shape
            patches = _im2col_3x3(x)
            wmat = jnp.transpose(wgt, (2, 3, 1, 0)).reshape(9 * cin, wgt.shape[0])
            x = jnp.maximum(patches @ wmat + b, 0.0)
    x = x.mean(axis=(1, 2))
    (w1, b1), (w2, b2), (w3, b3) = params['linears']
    x = jnp.maximum(x @ w1 + b1, 0.0)
    x = jnp.maximum(x @ w2 + b2, 0.0)
    return x @ w3 + b3


if __name__ == "__main__":
    key = jax.random.PRNGKey(0)
    key, kx = jax.random.split(key)
    N, C, H, W = 2, 3, 16, 16                      # NCHW, PyTorch convention
    x = jax.random.normal(kx, (N, C, H, W), jnp.float32)

    params = init_params(key, C, VGG11_ARCH, CLF_DIMS)

    out = vgg_forward(params, x)
    out = jax.block_until_ready(out)

    ref = vgg_reference(params, x)
    assert out.shape == (N, CLF_DIMS[-1]), out.shape
    # bf16 MXU operands (per perf review) vs the f32 reference: allow ~2-3% drift.
    assert jnp.allclose(out, ref, rtol=3e-2, atol=3e-2), (out, ref)
    print("KERNEL_OK")
</pallas_src>

<mosaic_0001>
module attributes {stable_mosaic.version = 11 : i64} {
  func.func @_roll_probe_kernel(%arg0: memref<8x256xf32, #tpu.memory_space<vmem>>, %arg1: memref<8x256xf32, #tpu.memory_space<vmem>>) attributes {dimension_semantics = [], scalar_prefetch = 0 : i64, scratch_operands = 0 : i64, tpu.core_type = #tpu.core_type<tc>} {
    %c0 = arith.constant 0 : index
    %c0_0 = arith.constant 0 : index
    %0 = vector.load %arg0[%c0, %c0_0] : memref<8x256xf32, #tpu.memory_space<vmem>>, vector<8x256xf32>
    %c3_i32 = arith.constant 3 : i32
    %1 = tpu.dynamic_rotate %0 by %c3_i32 dim 1 : vector<8x256xf32>, i32 -> vector<8x256xf32>
    %c0_1 = arith.constant 0 : index
    %c0_2 = arith.constant 0 : index
    %2 = vector.load %arg1[%c0_1, %c0_2] : memref<8x256xf32, #tpu.memory_space<vmem>>, vector<8x256xf32>
    tpu.vector_store %arg1[%c0_1, %c0_2], %1 {strides = array<i32>} : memref<8x256xf32, #tpu.memory_space<vmem>>, vector<8x256xf32>,
    return
  }
}

</mosaic_0001>

<llo_original>
// kernel: tpu_custom_call.1
$region0: #{tpu_custom_call.1}
  #allocation0 [shape = 'u32[]', space=smem, size = 0x4, offset = 0x4, fixed_abs, tag = 'smem constant byte address 0x4 - core index']
  #allocation1 [shape = 'u32[144,128]{1,0:T(1,128)}', space=vmem, size = 0x12000, scoped, tag = 'internal scratch']
  %s0 = inlined_call_operand.hbm [shape: f32[8,256], index: 0, kind: input, shape index: {}]
  %s1 = inlined_call_operand.hbm [shape: f32[8,256], index: 1, kind: output, shape index: {}]
  %s2 = sld [smem:[#allocation0]]
  $region18: #{tpu_custom_call.1} parent=0
    _
  %s4 = ssub.s32 1, %s2
  %s5 = scalar_select 0, %s4, %s2
  $region1: #{tpu_custom_call.1} parent=0
    #allocation2 [shape = 'u8[8192]{0}', space=vmem, size = 0x2000, scoped, tag = 'input window, operand 0, single buffered']
    #allocation3 [shape = 's32[1]{0}', space=sflag, size = 0x4, scoped, tag = 'scoped memory for tpu_custom_call.1']
    #allocation4 [shape = 's32[1]{0}', space=sflag, size = 0x4, scoped, tag = 'scoped memory for tpu_custom_call.1']
    #allocation5 [shape = 'u8[8192]{0}', space=vmem, size = 0x2000, scoped, tag = 'output window, operand 0, single buffered']
    %6 = vsyncpa [#allocation3], 0
    %7 = vsyncpa [#allocation4], 0
    // Predicated region
    $region2: #{tpu_custom_call.1} parent=1 // pred_check
      _
    $region3: #{tpu_custom_call.1} parent=1 // pred_check_branch
      %9 = sbr.rel (0) target = $region5
    $region4: #{tpu_custom_call.1} parent=1 // pred_region
      %s11 = ssub.s32 256, 256
      %12 = vsyncadd [#allocation3], %s11
      %s14 = sshll.u32 [#allocation2], 4
      %s15 = int_to_ptr.vmem [resolvable:$true] %s14
      %17 = dma.hbm_to_vmem [thread:$0]  %s0, 256, %s15, [#allocation3]
    $region5: #{tpu_custom_call.1} parent=1 // pred_fallthru
      _
    // Predicated region
    $region6: #{tpu_custom_call.1} parent=1 // pred_check
      _
    $region7: #{tpu_custom_call.1} parent=1 // pred_check_branch
      %19 = sbr.rel (0) target = $region9
    $region8: #{tpu_custom_call.1} parent=1 // pred_region
      %20 = dma.done [#allocation3], 256
    $region9: #{tpu_custom_call.1} parent=1 // pred_fallthru
      _
    %v21 = vld [vmem:[#allocation2] sm:$0xff]
    %v22 = vld [vmem:[#allocation2 + $0x8] sm:$0xff]
    %23 = vrot.lane.b32.xlu0 %v21, 3
    %v24 = vpop.permute.xlu0 %23
    %25 = vrot.lane.b32.xlu0 %v22, 3
    %v26 = vpop.permute.xlu0 %25
    %v27 = vlaneseq
    %v28 = vand.u32 %v27, 127
    %vm29 = vcmp.lt.s32.totalorder %v28, 3
    %v30 = vsel %vm29, %v24, %v26
    %v31 = vsel %vm29, %v26, %v24
    %32 = vst [vmem:[#allocation5] sm:$0xff] %v31
    %33 = vst [vmem:[#allocation5 + $0x8] sm:$0xff] %v30
    // Predicated region
    $region10: #{tpu_custom_call.1} parent=1 // pred_check
      _
    $region11: #{tpu_custom_call.1} parent=1 // pred_check_branch
      %35 = sbr.rel (0) target = $region13
    $region12: #{tpu_custom_call.1} parent=1 // pred_region
      %s37 = ssub.s32 256, 256
      %38 = vsyncadd [#allocation4], %s37
      %s40 = sshll.u32 [#allocation5], 4
      %s41 = int_to_ptr.vmem [resolvable:$true] %s40
      %43 = dma.vmem_to_hbm [thread:$0]  %s41, 256, %s1, [#allocation4]
    $region13: #{tpu_custom_call.1} parent=1 // pred_fallthru
      _
    // Predicated region
    $region14: #{tpu_custom_call.1} parent=1 // pred_check
      _
    $region15: #{tpu_custom_call.1} parent=1 // pred_check_branch
      %45 = sbr.rel (0) target = $region17
    $region16: #{tpu_custom_call.1} parent=1 // pred_region
      %46 = dma.done [#allocation4], 256
    $region17: #{tpu_custom_call.1} parent=1 // pred_fallthru
      _
    %47 = vsyncpa [#allocation3], 1
    %48 = vsyncpa [#allocation4], 1

</llo_original>
